<compile_context>
chip_gen: v7x
topology: tpu7x:2x2x1
jax: 0.10.0
libtpu: 0.0.40
codegen_flags: <defaults>
</compile_context>

<pallas_src>
import jax
import jax.numpy as jnp
from jax.experimental import pallas as pl
from jax.experimental.pallas import tpu as pltpu

EPSILON = 1e-12


# ---------------------------------------------------------------------------
# Kernel 1: 1x1 conv (as matmul) + folded BatchNorm + ReLU
#   x: (P, Cin) channels-last rows, w: (Cin, M), scale/shift: (1, M)
#   grid over the Cin reduction axis; f32 accumulator in VMEM scratch.
# ---------------------------------------------------------------------------
def _conv1x1_bn_relu_kernel(x_ref, w_ref, scale_ref, shift_ref, o_ref, acc_ref):
    k = pl.program_id(0)

    @pl.when(k == 0)
    def _():
        acc_ref[...] = jnp.zeros_like(acc_ref)

    acc_ref[...] += jnp.dot(
        x_ref[...].astype(jnp.float32),
        w_ref[...].astype(jnp.float32),
        preferred_element_type=jnp.float32,
    )

    @pl.when(k == pl.num_programs(0) - 1)
    def _():
        y = acc_ref[...] * scale_ref[...] + shift_ref[...]
        o_ref[...] = jnp.maximum(y, 0.0).astype(o_ref.dtype)


def conv1x1_bn_relu(x, w, scale, shift, *, tk=512):
    P, cin = x.shape
    m = w.shape[1]
    tk = min(tk, cin)
    assert cin % tk == 0
    return pl.pallas_call(
        _conv1x1_bn_relu_kernel,
        out_shape=jax.ShapeDtypeStruct((P, m), jnp.float32),
        grid_spec=pltpu.PrefetchScalarGridSpec(
            num_scalar_prefetch=0,
            grid=(cin // tk,),
            in_specs=[
                pl.BlockSpec((P, tk), lambda k: (0, k)),
                pl.BlockSpec((tk, m), lambda k: (k, 0)),
                pl.BlockSpec((1, m), lambda k: (0, 0)),
                pl.BlockSpec((1, m), lambda k: (0, 0)),
            ],
            out_specs=pl.BlockSpec((P, m), lambda k: (0, 0)),
            scratch_shapes=[pltpu.VMEM((P, m), jnp.float32)],
        ),
        compiler_params=pltpu.CompilerParams(dimension_semantics=("arbitrary",)),
    )(x, w, scale, shift)


# ---------------------------------------------------------------------------
# Kernel 2: BAP (GAP pooling) fused with signed-sqrt + L2 normalization.
#   attn: (B, M, HW), feat: (B, HW, C) -> normalized feature matrix (B, M, C)
#   One batch element per grid step ("parallel" -> megacore-shardable).
# ---------------------------------------------------------------------------
def _bap_kernel(a_ref, f_ref, o_ref):
    a = a_ref[0].astype(jnp.float32)              # (M, HW)
    f = f_ref[0].astype(jnp.float32)              # (HW, C)
    hw = a.shape[-1]
    p = jnp.dot(a, f, preferred_element_type=jnp.float32) * (1.0 / float(hw))
    sgn = (p > 0.0).astype(jnp.float32) - (p < 0.0).astype(jnp.float32)
    phi = sgn * jnp.sqrt(jnp.abs(p) + EPSILON)    # signed sqrt
    nrm = jnp.sqrt(jnp.sum(phi * phi))            # L2 norm over the whole (M*C) row
    inv = 1.0 / jnp.maximum(nrm, 1e-12)           # F.normalize eps
    o_ref[0] = (phi * inv).astype(o_ref.dtype)


def bap(attn_flat, feat_flat):
    B, m, hw = attn_flat.shape
    _, _, c = feat_flat.shape
    return pl.pallas_call(
        _bap_kernel,
        out_shape=jax.ShapeDtypeStruct((B, m, c), jnp.float32),
        grid_spec=pltpu.PrefetchScalarGridSpec(
            num_scalar_prefetch=0,
            grid=(B,),
            in_specs=[
                pl.BlockSpec((1, m, hw), lambda b: (b, 0, 0)),
                pl.BlockSpec((1, hw, c), lambda b: (b, 0, 0)),
            ],
            out_specs=pl.BlockSpec((1, m, c), lambda b: (b, 0, 0)),
        ),
        compiler_params=pltpu.CompilerParams(dimension_semantics=("parallel",)),
    )(attn_flat, feat_flat)


# ---------------------------------------------------------------------------
# Kernel 3: logits = (feature_matrix * 100) @ w_fc   (bias-free FC)
#   K-tiled reduction with f32 accumulator; x100 folded into finalize.
# ---------------------------------------------------------------------------
def _fc_kernel(x_ref, w_ref, o_ref, acc_ref):
    k = pl.program_id(0)

    @pl.when(k == 0)
    def _():
        acc_ref[...] = jnp.zeros_like(acc_ref)

    acc_ref[...] += jnp.dot(
        x_ref[...].astype(jnp.float32),
        w_ref[...].astype(jnp.float32),
        preferred_element_type=jnp.float32,
    )

    @pl.when(k == pl.num_programs(0) - 1)
    def _():
        o_ref[...] = (100.0 * acc_ref[...]).astype(o_ref.dtype)


def fc_scaled(x, w, *, tk=8192):
    B, K = x.shape
    _, n = w.shape
    tk = min(tk, K)
    assert K % tk == 0
    return pl.pallas_call(
        _fc_kernel,
        out_shape=jax.ShapeDtypeStruct((B, n), jnp.float32),
        grid_spec=pltpu.PrefetchScalarGridSpec(
            num_scalar_prefetch=0,
            grid=(K // tk,),
            in_specs=[
                pl.BlockSpec((B, tk), lambda k: (0, k)),
                pl.BlockSpec((tk, n), lambda k: (k, 0)),
            ],
            out_specs=pl.BlockSpec((B, n), lambda k: (0, 0)),
            scratch_shapes=[pltpu.VMEM((B, n), jnp.float32)],
        ),
        compiler_params=pltpu.CompilerParams(dimension_semantics=("arbitrary",)),
    )(x, w)


# ---------------------------------------------------------------------------
# res50Encoder.forward (head), built from the kernels above.
# ---------------------------------------------------------------------------
def res50_encoder_forward(features_1, features_2, params, key, training=True):
    # TODO(synk): the torchvision ResNet-50 backbone (conv1/bn1/relu/maxpool/
    # layer1..layer4) is not translated; features_1/features_2 are the layer3/
    # layer4 feature maps the backbone would produce.
    # TODO(synk): BatchNorm is applied in folded (eval-mode) scale/shift form;
    # train-mode batch statistics are not computed.
    B, C1, H1, W1 = features_1.shape
    _, C2, H2, W2 = features_2.shape
    assert H1 == 2 * H2 and W1 == 2 * W2
    M = params["w_tex"].shape[1]

    # channels-last row layout so channels map to the lane dim inside the kernels
    f1_rows = jnp.transpose(features_1, (0, 2, 3, 1)).reshape(B * H1 * W1, C1)
    f2_rows = jnp.transpose(features_2, (0, 2, 3, 1)).reshape(B * H2 * W2, C2)

    # DblAttentionModule
    texture = conv1x1_bn_relu(
        f1_rows, params["w_tex"], params["bn_tex_scale"], params["bn_tex_shift"]
    ).reshape(B, H1, W1, M)
    target = conv1x1_bn_relu(
        f2_rows, params["w_tgt"], params["bn_tgt_scale"], params["bn_tgt_shift"]
    ).reshape(B, H2, W2, M)
    texture_pooled = texture.reshape(B, H2, 2, W2, 2, M).mean(axis=(2, 4))  # AvgPool2d(2,2)
    attention_hwm = target + texture_pooled                                  # (B, H2, W2, M)
    attention_maps = jnp.transpose(attention_hwm, (0, 3, 1, 2))              # (B, M, H2, W2)

    # BAP (GAP): fused einsum/HW + signed-sqrt + L2 normalize
    attn_flat = attention_maps.reshape(B, M, H2 * W2)
    feat_flat = jnp.transpose(features_2, (0, 2, 3, 1)).reshape(B, H2 * W2, C2)
    feature_matrix = bap(attn_flat, feat_flat).reshape(B, M * C2)

    # logits = fc(feature_matrix * 100)
    logits = fc_scaled(feature_matrix, params["w_fc"])

    if training:
        # per-sample weighted random choice of 3 attention maps (replaces np.random.choice)
        aw = jnp.sqrt(jnp.sum(attention_maps, axis=(2, 3)) + EPSILON)        # (B, M)
        aw = aw / jnp.maximum(jnp.sum(aw, axis=1, keepdims=True), 1e-12)     # L1 normalize
        keys = jax.random.split(key, B)
        idx = jnp.stack(
            [jax.random.choice(keys[i], M, shape=(3,), p=aw[i]) for i in range(B)]
        )                                                                    # (B, 3)
        attention_map = attention_maps[jnp.arange(B)[:, None], idx]          # (B, 3, H2, W2)
    else:
        attention_map = jnp.mean(attention_maps, axis=1, keepdims=True)

    return logits, features_1, attention_map


# ---------------------------------------------------------------------------
# Pure-JAX reference (same folded-BN semantics) for correctness checking.
# ---------------------------------------------------------------------------
def _reference(features_1, features_2, params):
    def conv_bn_relu(x_nchw, w, scale, shift):
        B, C, H, W = x_nchw.shape
        xf = jnp.transpose(x_nchw, (0, 2, 3, 1)).reshape(-1, C).astype(jnp.float32)
        y = jnp.maximum(xf @ w * scale + shift, 0.0)
        return jnp.transpose(y.reshape(B, H, W, -1), (0, 3, 1, 2))

    tex = conv_bn_relu(features_1, params["w_tex"], params["bn_tex_scale"], params["bn_tex_shift"])
    tgt = conv_bn_relu(features_2, params["w_tgt"], params["bn_tgt_scale"], params["bn_tgt_shift"])
    B, M, H2, W2 = tgt.shape
    tex_pool = tex.reshape(B, M, H2, 2, W2, 2).mean(axis=(3, 5))
    attn = tgt + tex_pool
    fm = jnp.einsum("imjk,injk->imn", attn, features_2.astype(jnp.float32)) / float(H2 * W2)
    fm = fm.reshape(B, -1)
    fm = jnp.sign(fm) * jnp.sqrt(jnp.abs(fm) + EPSILON)
    fm = fm / jnp.maximum(jnp.linalg.norm(fm, axis=-1, keepdims=True), 1e-12)
    logits = (fm * 100.0) @ params["w_fc"]
    return logits, attn


if __name__ == "__main__":
    root = jax.random.PRNGKey(0)
    (kf1, kf2, kwt, kwg, kbs1, kbt1, kbs2, kbt2, kwfc, ksel) = jax.random.split(root, 10)

    B = 2
    C1, H1, W1 = 1024, 8, 8      # layer3-style features (real res50 @480px: 1024 x 30 x 30)
    C2, H2, W2 = 2048, 4, 4      # layer4-style features (real res50 @480px: 2048 x 15 x 15)
    M = 32                       # config['attention_map_num']
    NUM_CLASSES = 2              # config['class_num']

    features_1 = jax.nn.relu(jax.random.normal(kf1, (B, C1, H1, W1), jnp.float32))
    features_2 = jax.nn.relu(jax.random.normal(kf2, (B, C2, H2, W2), jnp.float32))

    params = {
        "w_tex": jax.random.normal(kwt, (C1, M), jnp.float32) * 0.05,
        "w_tgt": jax.random.normal(kwg, (C2, M), jnp.float32) * 0.05,
        "bn_tex_scale": jnp.abs(jax.random.normal(kbs1, (1, M), jnp.float32)) * 0.5 + 0.5,
        "bn_tex_shift": jax.random.normal(kbt1, (1, M), jnp.float32) * 0.1,
        "bn_tgt_scale": jnp.abs(jax.random.normal(kbs2, (1, M), jnp.float32)) * 0.5 + 0.5,
        "bn_tgt_shift": jax.random.normal(kbt2, (1, M), jnp.float32) * 0.1,
        "w_fc": jax.random.normal(kwfc, (M * C2, NUM_CLASSES), jnp.float32) * 0.01,
    }

    logits, feats1_out, attention_map = res50_encoder_forward(
        features_1, features_2, params, ksel, training=True
    )
    logits = jax.block_until_ready(logits)
    attention_map = jax.block_until_ready(attention_map)

    ref_logits, _ = _reference(features_1, features_2, params)

    assert logits.shape == (B, NUM_CLASSES)
    assert feats1_out.shape == (B, C1, H1, W1)
    assert attention_map.shape == (B, 3, H2, W2)
    assert jnp.allclose(logits, ref_logits, atol=2e-3, rtol=2e-3), (logits, ref_logits)

    print("KERNEL_OK")
</pallas_src>

<mosaic_0001>
module attributes {stable_mosaic.version = 11 : i64} {
  func.func @_conv1x1_bn_relu_kernel(%arg0: i32, %arg1: memref<128x512xf32, #tpu.memory_space<vmem>>, %arg2: memref<512x32xf32, #tpu.memory_space<vmem>>, %arg3: memref<1x32xf32, #tpu.memory_space<vmem>>, %arg4: memref<1x32xf32, #tpu.memory_space<vmem>>, %arg5: memref<128x32xf32, #tpu.memory_space<vmem>>, %arg6: memref<128x32xf32, #tpu.memory_space<vmem>>) attributes {dimension_semantics = [#tpu.dimension_semantics<arbitrary>], iteration_bounds = array<i64: 2>, scalar_prefetch = 0 : i64, scratch_operands = 1 : i64, tpu.core_type = #tpu.core_type<tc>, window_params = [{transform_indices = @transform_0, window_bounds = array<i64: 128, 512>}, {transform_indices = @transform_1, window_bounds = array<i64: 512, 32>}, {pipeline_mode = #tpu.pipeline_mode<synchronous>, transform_indices = @transform_2, window_bounds = array<i64: 1, 32>}, {pipeline_mode = #tpu.pipeline_mode<synchronous>, transform_indices = @transform_3, window_bounds = array<i64: 1, 32>}, {pipeline_mode = #tpu.pipeline_mode<synchronous>, transform_indices = @transform_4, window_bounds = array<i64: 128, 32>}]} {
    %c0_i32 = arith.constant 0 : i32
    %0 = arith.cmpi eq, %arg0, %c0_i32 : i32
    %1 = arith.extui %0 : i1 to i32
    %c0_i32_0 = arith.constant 0 : i32
    %2 = arith.cmpi ne, %1, %c0_i32_0 : i32
    scf.if %2 {
      %cst_9 = arith.constant 0.000000e+00 : f32
      %12 = vector.broadcast %cst_9 : f32 to vector<128x32xf32>
      %c0_10 = arith.constant 0 : index
      %c0_11 = arith.constant 0 : index
      %13 = vector.load %arg6[%c0_10, %c0_11] : memref<128x32xf32, #tpu.memory_space<vmem>>, vector<128x32xf32>
      tpu.vector_store %arg6[%c0_10, %c0_11], %12 {strides = array<i32>} : memref<128x32xf32, #tpu.memory_space<vmem>>, vector<128x32xf32>,
    } else {
    }
    %c0 = arith.constant 0 : index
    %c0_1 = arith.constant 0 : index
    %3 = vector.load %arg6[%c0, %c0_1] : memref<128x32xf32, #tpu.memory_space<vmem>>, vector<128x32xf32>
    %c0_2 = arith.constant 0 : index
    %c0_3 = arith.constant 0 : index
    %4 = vector.load %arg1[%c0_2, %c0_3] : memref<128x512xf32, #tpu.memory_space<vmem>>, vector<128x512xf32>
    %c0_4 = arith.constant 0 : index
    %c0_5 = arith.constant 0 : index
    %5 = vector.load %arg2[%c0_4, %c0_5] : memref<512x32xf32, #tpu.memory_space<vmem>>, vector<512x32xf32>
    %cst = arith.constant dense<0.000000e+00> : vector<128x32xf32>
    %6 = tpu.matmul %4, %5, %cst {dimension_numbers = #tpu.dot_dimension_numbers<[1], [0], [0], [1], [0, 0, 1, 1], [], []>} : vector<128x512xf32>, vector<512x32xf32>, vector<128x32xf32> -> vector<128x32xf32>
    %7 = arith.addf %3, %6 : vector<128x32xf32>
    %c0_6 = arith.constant 0 : index
    %c0_7 = arith.constant 0 : index
    %8 = vector.load %arg6[%c0_6, %c0_7] : memref<128x32xf32, #tpu.memory_space<vmem>>, vector<128x32xf32>
    tpu.vector_store %arg6[%c0_6, %c0_7], %7 {strides = array<i32>} : memref<128x32xf32, #tpu.memory_space<vmem>>, vector<128x32xf32>,
    %c1_i32 = arith.constant 1 : i32
    %9 = arith.cmpi eq, %arg0, %c1_i32 : i32
    %10 = arith.extui %9 : i1 to i32
    %c0_i32_8 = arith.constant 0 : i32
    %11 = arith.cmpi ne, %10, %c0_i32_8 : i32
    scf.if %11 {
      %c0_9 = arith.constant 0 : index
      %c0_10 = arith.constant 0 : index
      %12 = vector.load %arg6[%c0_9, %c0_10] : memref<128x32xf32, #tpu.memory_space<vmem>>, vector<128x32xf32>
      %c0_11 = arith.constant 0 : index
      %c0_12 = arith.constant 0 : index
      %13 = vector.load %arg3[%c0_11, %c0_12] : memref<1x32xf32, #tpu.memory_space<vmem>>, vector<1x32xf32>
      %14 = vector.broadcast %13 : vector<1x32xf32> to vector<128x32xf32>
      %15 = arith.mulf %12, %14 : vector<128x32xf32>
      %c0_13 = arith.constant 0 : index
      %c0_14 = arith.constant 0 : index
      %16 = vector.load %arg4[%c0_13, %c0_14] : memref<1x32xf32, #tpu.memory_space<vmem>>, vector<1x32xf32>
      %17 = vector.broadcast %16 : vector<1x32xf32> to vector<128x32xf32>
      %18 = arith.addf %15, %17 : vector<128x32xf32>
      %cst_15 = arith.constant 0.000000e+00 : f32
      %19 = vector.broadcast %cst_15 : f32 to vector<128x32xf32>
      %20 = arith.maximumf %18, %19 : vector<128x32xf32>
      %c0_16 = arith.constant 0 : index
      %c0_17 = arith.constant 0 : index
      %21 = vector.load %arg5[%c0_16, %c0_17] : memref<128x32xf32, #tpu.memory_space<vmem>>, vector<128x32xf32>
      tpu.vector_store %arg5[%c0_16, %c0_17], %20 {strides = array<i32>} : memref<128x32xf32, #tpu.memory_space<vmem>>, vector<128x32xf32>,
    } else {
    }
    return
  }
  func.func @transform_0(%arg0: i32) -> (i32, i32) {
    %c0_i32 = arith.constant 0 : i32
    %c0_i32_0 = arith.constant 0 : i32
    return %c0_i32, %arg0 : i32, i32
  }
  func.func @transform_1(%arg0: i32) -> (i32, i32) {
    %c0_i32 = arith.constant 0 : i32
    %c0_i32_0 = arith.constant 0 : i32
    return %arg0, %c0_i32 : i32, i32
  }
  func.func @transform_2(%arg0: i32) -> (i32, i32) {
    %c0_i32 = arith.constant 0 : i32
    %c0_i32_0 = arith.constant 0 : i32
    %c0_i32_1 = arith.constant 0 : i32
    return %c0_i32, %c0_i32_0 : i32, i32
  }
  func.func @transform_3(%arg0: i32) -> (i32, i32) {
    %c0_i32 = arith.constant 0 : i32
    %c0_i32_0 = arith.constant 0 : i32
    %c0_i32_1 = arith.constant 0 : i32
    return %c0_i32, %c0_i32_0 : i32, i32
  }
  func.func @transform_4(%arg0: i32) -> (i32, i32) {
    %c0_i32 = arith.constant 0 : i32
    %c0_i32_0 = arith.constant 0 : i32
    %c0_i32_1 = arith.constant 0 : i32
    return %c0_i32, %c0_i32_0 : i32, i32
  }
}

</mosaic_0001>

<llo_original>
// kernel: tpu_custom_call.1
$region0: #{tpu_custom_call.1}
  #allocation0 [shape = 'u32[]', space=smem, size = 0x4, offset = 0x4, fixed_abs, tag = 'smem constant byte address 0x4 - core index']
  #allocation1 [shape = 'u32[144,128]{1,0:T(1,128)}', space=vmem, size = 0x12000, scoped, tag = 'internal scratch']
  #allocation2 [shape = 'f32[128,32]{1,0:T(8,128)}', space=vmem, size = 0x10000, scoped, tag = 'scratch operand']
  %s0 = inlined_call_operand.vmem [shape: f32[128,1024], index: 0, kind: input, shape index: {}]
  %s1 = inlined_call_operand.vmem [shape: f32[1024,32], index: 1, kind: input, shape index: {}]
  %s2 = inlined_call_operand.vmem [shape: f32[1,32], index: 2, kind: input, shape index: {}]
  %s3 = inlined_call_operand.vmem [shape: f32[1,32], index: 3, kind: input, shape index: {}]
  %s4 = inlined_call_operand.vmem [shape: f32[128,32], index: 4, kind: output, shape index: {}]
  %s5 = sld [smem:[#allocation0]]
  $region80: #{tpu_custom_call.1} parent=0
    _
  %s7 = ssub.s32 1, %s5
  %s8 = scalar_select 0, %s7, %s5
  $region1: #{tpu_custom_call.1} parent=0
    #allocation3 [shape = 'u8[524288]{0}', space=vmem, size = 0x80000, scoped, tag = 'input window, operand 0']
    loop: start=0, step=1, limit=4
    $region2: #{tpu_custom_call.1} parent=1 // loop_pre_header
      _
    $region3: #{tpu_custom_call.1} parent=1 // loop_header
      %s10 = sphi 0, %s14
      %p11 = scmp.ge.s32.totalorder %s10, 4
      %s20 = sphi 0, %s22
      %s23 = sphi 0, %s20
      %s24 = sphi 0, %s23
      %s40 = sphi 0, %s24
      %s46 = sphi 0, %s48
      %s49 = sphi 0, %s46
      %s50 = sphi 0, %s49
      %s66 = sphi 0, %s50
      %s70 = sphi 0, %s70
      %s72 = sphi 0, %s70
      %s73 = sphi 0, %s72
      %s87 = sphi 0, %s73
      %s91 = sphi 0, %s91
      %s93 = sphi 0, %s91
      %s94 = sphi 0, %s93
      %s108 = sphi 0, %s94
      %s112 = sphi 0, %s112
      %s114 = sphi 0, %s112
      %s115 = sphi 0, %s114
      %s129 = sphi 0, %s115
    $region4: #{tpu_custom_call.1} parent=1 // loop_header_branch
      %13 = sbr.rel (%p11) target = $region8
    $region5: #{tpu_custom_call.1} parent=1 // loop_body
      %s15 = ssub.s32 %s10, 1
      %s16 = ssub.s32 %s10, 2
      %s17 = sadd.s32 %s10, 1
      %s18 = ssub.s32 %s10, %s17
      %p19 = scmp.eq.s32.totalorder %s18, 0
      %s21 = sadd.s32 %s20, 1
      %s22 = scalar_select %p19, %s20, %s21
      %p25 = pneg %p19
      %p26 = scmp.eq.s32.totalorder %s10, 1
      %p27 = por %p25, %p26
      %p28 = scmp.ne.s32.totalorder %s20, %s23
      %p29 = scmp.eq.s32.totalorder %s10, 0
      %p30 = por %p28, %p29
      %p31 = scmp.ne.s32.totalorder %s20, %s23
      %p32 = scmp.eq.s32.totalorder %s15, 1
      %p33 = por %p31, %p32
      %p34 = scmp.ne.s32.totalorder %s23, %s24
      %p35 = scmp.eq.s32.totalorder %s15, 0
      %p36 = por %p34, %p35
      %p37 = scmp.ne.s32.totalorder %s23, %s24
      %p38 = scmp.eq.s32.totalorder %s16, 1
      %p39 = por %p37, %p38
      %p41 = scmp.ne.s32.totalorder %s24, %s40
      %p42 = scmp.eq.s32.totalorder %s16, 0
      %p43 = por %p41, %p42
      %s44 = ssub.s32 %s10, %s17
      %p45 = scmp.eq.s32.totalorder %s44, 0
      %s47 = sadd.s32 %s46, 1
      %s48 = scalar_select %p45, %s46, %s47
      %p51 = pneg %p45
      %p52 = scmp.eq.s32.totalorder %s10, 1
      %p53 = por %p51, %p52
      %p54 = scmp.ne.s32.totalorder %s46, %s49
      %p55 = scmp.eq.s32.totalorder %s10, 0
      %p56 = por %p54, %p55
      %p57 = scmp.ne.s32.totalorder %s46, %s49
      %p58 = scmp.eq.s32.totalorder %s15, 1
      %p59 = por %p57, %p58
      %p60 = scmp.ne.s32.totalorder %s49, %s50
      %p61 = scmp.eq.s32.totalorder %s15, 0
      %p62 = por %p60, %p61
      %p63 = scmp.ne.s32.totalorder %s49, %s50
      %p64 = scmp.eq.s32.totalorder %s16, 1
      %p65 = por %p63, %p64
      %p67 = scmp.ne.s32.totalorder %s50, %s66
      %p68 = scmp.eq.s32.totalorder %s16, 0
      %p69 = por %p67, %p68
      %s71 = sadd.s32 %s70, 1
      %p74 = scmp.eq.s32.totalorder %s10, 1
      %p75 = scmp.ne.s32.totalorder %s70, %s72
      %p76 = scmp.eq.s32.totalorder %s10, 0
      %p77 = por %p75, %p76
      %p78 = scmp.ne.s32.totalorder %s70, %s72
      %p79 = scmp.eq.s32.totalorder %s15, 1
      %p80 = por %p78, %p79
      %p81 = scmp.ne.s32.totalorder %s72, %s73
      %p82 = scmp.eq.s32.totalorder %s15, 0
      %p83 = por %p81, %p82
      %p84 = scmp.ne.s32.totalorder %s72, %s73
      %p85 = scmp.eq.s32.totalorder %s16, 1
      %p86 = por %p84, %p85
      %p88 = scmp.ne.s32.totalorder %s73, %s87
      %p89 = scmp.eq.s32.totalorder %s16, 0
      %p90 = por %p88, %p89
      %s92 = sadd.s32 %s91, 1
      %p95 = scmp.eq.s32.totalorder %s10, 1
      %p96 = scmp.ne.s32.totalorder %s91, %s93
      %p97 = scmp.eq.s32.totalorder %s10, 0
      %p98 = por %p96, %p97
      %p99 = scmp.ne.s32.totalorder %s91, %s93
      %p100 = scmp.eq.s32.totalorder %s15, 1
      %p101 = por %p99, %p100
      %p102 = scmp.ne.s32.totalorder %s93, %s94
      %p103 = scmp.eq.s32.totalorder %s15, 0
      %p104 = por %p102, %p103
      %p105 = scmp.ne.s32.totalorder %s93, %s94
      %p106 = scmp.eq.s32.totalorder %s16, 1
      %p107 = por %p105, %p106
      %p109 = scmp.ne.s32.totalorder %s94, %s108
      %p110 = scmp.eq.s32.totalorder %s16, 0
      %p111 = por %p109, %p110
      %s113 = sadd.s32 %s112, 1
      %p116 = scmp.eq.s32.totalorder %s10, 1
      %p117 = scmp.ne.s32.totalorder %s112, %s114
      %p118 = scmp.eq.s32.totalorder %s10, 0
      %p119 = por %p117, %p118
      %p120 = scmp.ne.s32.totalorder %s112, %s114
      %p121 = scmp.eq.s32.totalorder %s15, 1
      %p122 = por %p120, %p121
      %p123 = scmp.ne.s32.totalorder %s114, %s115
      %p124 = scmp.eq.s32.totalorder %s15, 0
      %p125 = por %p123, %p124
      %p126 = scmp.ne.s32.totalorder %s114, %s115
      %p127 = scmp.eq.s32.totalorder %s16, 1
      %p128 = por %p126, %p127
      %p130 = scmp.ne.s32.totalorder %s115, %s129
      %p131 = scmp.eq.s32.totalorder %s16, 0
      %p132 = por %p130, %p131
      %p133 = scmp.le.s32.totalorder 1, %s10
      %p134 = scmp.lt.s32.totalorder %s10, 3
      %p135 = pnand %p133, %p134
      %p136 = pneg %p135
      // Predicated region
      $region9: #{tpu_custom_call.1} parent=5 // pred_check
        _
      $region10: #{tpu_custom_call.1} parent=5 // pred_check_branch
        %138 = sbr.rel (%p135) target = $region12
      $region11: #{tpu_custom_call.1} parent=5 // pred_region
        %s139 = ssub.s32 %s10, 1
        // Predicated region
        $region13: #{tpu_custom_call.1} parent=11 // pred_check
          %p140 = pneg %p83
        $region14: #{tpu_custom_call.1} parent=11 // pred_check_branch
          %142 = sbr.rel (%p140) target = $region16
        $region15: #{tpu_custom_call.1} parent=11 // pred_region
          _
        $region16: #{tpu_custom_call.1} parent=11 // pred_fallthru
          _
        // Predicated region
        $region17: #{tpu_custom_call.1} parent=11 // pred_check
          %p143 = pneg %p104
        $region18: #{tpu_custom_call.1} parent=11 // pred_check_branch
          %145 = sbr.rel (%p143) target = $region20
        $region19: #{tpu_custom_call.1} parent=11 // pred_region
          _
        $region20: #{tpu_custom_call.1} parent=11 // pred_fallthru
          _
      $region12: #{tpu_custom_call.1} parent=5 // pred_fallthru
        _
      %p146 = scmp.lt.s32.totalorder %s10, 2
      // Predicated region
      $region21: #{tpu_custom_call.1} parent=5 // pred_check
        %p147 = pneg %p146
      $region22: #{tpu_custom_call.1} parent=5 // pred_check_branch
        %149 = sbr.rel (%p147) target = $region24
      $region23: #{tpu_custom_call.1} parent=5 // pred_region
        // Predicated region
        $region25: #{tpu_custom_call.1} parent=23 // pred_check
          %p150 = pneg %p30
        $region26: #{tpu_custom_call.1} parent=23 // pred_check_branch
          %152 = sbr.rel (%p150) target = $region28
        $region27: #{tpu_custom_call.1} parent=23 // pred_region
          %s153 = sand.u32 %s20, 1
          %s154 = sand.u32 %s20, 1
          %s155 = smul.addr %s154, 512
          %s156 = scalar_lea.vmem [#allocation3], %s155
          %s157 = smul.u32 4, %s10
          %s158 = smul.addr %s157, 8
          %s159 = scalar_lea.vmem %s0, %s158
          // Predicated region
          $region29: #{tpu_custom_call.1} parent=27 // pred_check
            _
          $region30: #{tpu_custom_call.1} parent=27 // pred_check_branch
            %161 = sbr.rel (0) target = $region32
          $region31: #{tpu_custom_call.1} parent=27 // pred_region
            // Predicated region
            $region33: #{tpu_custom_call.1} parent=31 // pred_check
              _
            $region34: #{tpu_custom_call.1} parent=31 // pred_check_branch
              %163 = sbr.rel (0) target = $region36
            $region35: #{tpu_custom_call.1} parent=31 // pred_region
              loop: start=0, step=1, limit=1
              $region37: #{tpu_custom_call.1} parent=35 // loop_pre_header
                _
              $region38: #{tpu_custom_call.1} parent=35 // loop_header
                %s165 = sphi 0, %s169
                %p166 = scmp.ge.s32.totalorder %s165, 1
                %s170 = sphi %s159, %s159
                %s171 = sphi %s156, %s156
              $region39: #{tpu_custom_call.1} parent=35 // loop_header_branch
                %168 = sbr.rel (%p166) target = $region43
              $region40: #{tpu_custom_call.1} parent=35 // loop_body
                %v172 = vld [vmem:[%s170] sm:$0xff]
                %173 = vst [vmem:[%s171] sm:$0xff] %v172
                %v174 = vld [vmem:[%s170 + $0x8] sm:$0xff]
                %175 = vst [vmem:[%s171 + $0x8] sm:$0xff] %v174
                %v176 = vld [vmem:[%s170 + $0x10] sm:$0xff]
                %177 = vst [vmem:[%s171 + $0x10] sm:$0xff] %v176
                %v178 = vld [vmem:[%s170 + $0x18] sm:$0xff]
                %179 = vst [vmem:[%s171 + $0x18] sm:$0xff] %v178
                %v180 = vld [vmem:[%s170 + $0x40] sm:$0xff]
                %181 = vst [vmem:[%s171 + $0x20] sm:$0xff] %v180
                %v182 = vld [vmem:[%s170 + $0x48] sm:$0xff]
                %183 = vst [vmem:[%s171 + $0x28] sm:$0xff] %v182
                %v184 = vld [vmem:[%s170 + $0x50] sm:$0xff]
                %185 = vst [vmem:[%s171 + $0x30] sm:$0xff] %v184
                %v186 = vld [vmem:[%s170 + $0x58] sm:$0xff]
                %187 = vst [vmem:[%s171 + $0x38] sm:$0xff] %v186
                %v188 = vld [vmem:[%s170 + $0x80] sm:$0xff]
                %189 = vst [vmem:[%s171 + $0x40] sm:$0xff] %v188
                %v190 = vld [vmem:[%s170 + $0x88] sm:$0xff]
                %191 = vst [vmem:[%s171 + $0x48] sm:$0xff] %v190
                %v192 = vld [vmem:[%s170 + $0x90] sm:$0xff]
                %193 = vst [vmem:[%s171 + $0x50] sm:$0xff] %v192
                %v194 = vld [vmem:[%s170 + $0x98] sm:$0xff]
                %195 = vst [vmem:[%s171 + $0x58] sm:$0xff] %v194
                %v196 = vld [vmem:[%s170 + $0xc0] sm:$0xff]
                %197 = vst [vmem:[%s171 + $0x60] sm:$0xff] %v196
                %v198 = vld [vmem:[%s170 + $0xc8] sm:$0xff]
                %199 = vst [vmem:[%s171 + $0x68] sm:$0xff] %v198
                %v200 = vld [vmem:[%s170 + $0xd0] sm:$0xff]
                %201 = vst [vmem:[%s171 + $0x70] sm:$0xff] %v200
                %v202 = vld [vmem:[%s170 + $0xd8] sm:$0xff]
                %203 = vst [vmem:[%s171 + $0x78] sm:$0xff] %v202
                %v204 = vld [vmem:[%s170 + $0x100] sm:$0xff]
                %205 = vst [vmem:[%s171 + $0x80] sm:$0xff] %v204
                %v206 = vld [vmem:[%s170 + $0x108] sm:$0xff]
                %207 = vst [vmem:[%s171 + $0x88] sm:$0xff] %v206
                %v208 = vld [vmem:[%s170 + $0x110] sm:$0xff]
                %209 = vst [vmem:[%s171 + $0x90] sm:$0xff] %v208
                %v210 = vld [vmem:[%s170 + $0x118] sm:$0xff]
                %211 = vst [vmem:[%s171 + $0x98] sm:$0xff] %v210
                %v212 = vld [vmem:[%s170 + $0x140] sm:$0xff]
                %213 = vst [vmem:[%s171 + $0xa0] sm:$0xff] %v212
                %v214 = vld [vmem:[%s170 + $0x148] sm:$0xff]
                %215 = vst [vmem:[%s171 + $0xa8] sm:$0xff] %v214
                %v216 = vld [vmem:[%s170 + $0x150] sm:$0xff]
                %217 = vst [vmem:[%s171 + $0xb0] sm:$0xff] %v216
                %v218 = vld [vmem:[%s170 + $0x158] sm:$0xff]
                %219 = vst [vmem:[%s171 + $0xb8] sm:$0xff] %v218
                %v220 = vld [vmem:[%s170 + $0x180] sm:$0xff]
                %221 = vst [vmem:[%s171 + $0xc0] sm:$0xff] %v220
                %v222 = vld [vmem:[%s170 + $0x188] sm:$0xff]
                %223 = vst [vmem:[%s171 + $0xc8] sm:$0xff] %v222
                %v224 = vld [vmem:[%s170 + $0x190] sm:$0xff]
                %225 = vst [vmem:[%s171 + $0xd0] sm:$0xff] %v224
                %v226 = vld [vmem:[%s170 + $0x198] sm:$0xff]
                %227 = vst [vmem:[%s171 + $0xd8] sm:$0xff] %v226
                %v228 = vld [vmem:[%s170 + $0x1c0] sm:$0xff]
                %229 = vst [vmem:[%s171 + $0xe0] sm:$0xff] %v228
                %v230 = vld [vmem:[%s170 + $0x1c8] sm:$0xff]
                %231 = vst [vmem:[%s171 + $0xe8] sm:$0xff] %v230
                %v232 = vld [vmem:[%s170 + $0x1d0] sm:$0xff]
                %233 = vst [vmem:[%s171 + $0xf0] sm:$0xff] %v232
                %v234 = vld [vmem:[%s170 + $0x1d8] sm:$0xff]
                %235 = vst [vmem:[%s171 + $0xf8] sm:$0xff] %v234
                %v236 = vld [vmem:[%s170 + $0x200] sm:$0xff]
                %237 = vst [vmem:[%s171 + $0x100] sm:$0xff] %v236
                %v238 = vld [vmem:[%s170 + $0x208] sm:$0xff]
                %239 = vst [vmem:[%s171 + $0x108] sm:$0xff] %v238
                %v240 = vld [vmem:[%s170 + $0x210] sm:$0xff]
                %241 = vst [vmem:[%s171 + $0x110] sm:$0xff] %v240
                %v242 = vld [vmem:[%s170 + $0x218] sm:$0xff]
                %243 = vst [vmem:[%s171 + $0x118] sm:$0xff] %v242
                %v244 = vld [vmem:[%s170 + $0x240] sm:$0xff]
                %245 = vst [vmem:[%s171 + $0x120] sm:$0xff] %v244
                %v246 = vld [vmem:[%s170 + $0x248] sm:$0xff]
                %247 = vst [vmem:[%s171 + $0x128] sm:$0xff] %v246
                %v248 = vld [vmem:[%s170 + $0x250] sm:$0xff]
                %249 = vst [vmem:[%s171 + $0x130] sm:$0xff] %v248
                %v250 = vld [vmem:[%s170 + $0x258] sm:$0xff]
                %251 = vst [vmem:[%s171 + $0x138] sm:$0xff] %v250
                %v252 = vld [vmem:[%s170 + $0x280] sm:$0xff]
                %253 = vst [vmem:[%s171 + $0x140] sm:$0xff] %v252
                %v254 = vld [vmem:[%s170 + $0x288] sm:$0xff]
                %255 = vst [vmem:[%s171 + $0x148] sm:$0xff] %v254
                %v256 = vld [vmem:[%s170 + $0x290] sm:$0xff]
                %257 = vst [vmem:[%s171 + $0x150] sm:$0xff] %v256
                %v258 = vld [vmem:[%s170 + $0x298] sm:$0xff]
                %259 = vst [vmem:[%s171 + $0x158] sm:$0xff] %v258
                %v260 = vld [vmem:[%s170 + $0x2c0] sm:$0xff]
                %261 = vst [vmem:[%s171 + $0x160] sm:$0xff] %v260
                %v262 = vld [vmem:[%s170 + $0x2c8] sm:$0xff]
                %263 = vst [vmem:[%s171 + $0x168] sm:$0xff] %v262
                %v264 = vld [vmem:[%s170 + $0x2d0] sm:$0xff]
                %265 = vst [vmem:[%s171 + $0x170] sm:$0xff] %v264
                %v266 = vld [vmem:[%s170 + $0x2d8] sm:$0xff]
                %267 = vst [vmem:[%s171 + $0x178] sm:$0xff] %v266
                %v268 = vld [vmem:[%s170 + $0x300] sm:$0xff]
                %269 = vst [vmem:[%s171 + $0x180] sm:$0xff] %v268
                %v270 = vld [vmem:[%s170 + $0x308] sm:$0xff]
                %271 = vst [vmem:[%s171 + $0x188] sm:$0xff] %v270
                %v272 = vld [vmem:[%s170 + $0x310] sm:$0xff]
                %273 = vst [vmem:[%s171 + $0x190] sm:$0xff] %v272
                %v274 = vld [vmem:[%s170 + $0x318] sm:$0xff]
                %275 = vst [vmem:[%s171 + $0x198] sm:$0xff] %v274
                %v276 = vld [vmem:[%s170 + $0x340] sm:$0xff]
                %277 = vst [vmem:[%s171 + $0x1a0] sm:$0xff] %v276
                %v278 = vld [vmem:[%s170 + $0x348] sm:$0xff]
                %279 = vst [vmem:[%s171 + $0x1a8] sm:$0xff] %v278
                %v280 = vld [vmem:[%s170 + $0x350] sm:$0xff]
                %281 = vst [vmem:[%s171 + $0x1b0] sm:$0xff] %v280
                %v282 = vld [vmem:[%s170 + $0x358] sm:$0xff]
                %283 = vst [vmem:[%s171 + $0x1b8] sm:$0xff] %v282
                %v284 = vld [vmem:[%s170 + $0x380] sm:$0xff]
                %285 = vst [vmem:[%s171 + $0x1c0] sm:$0xff] %v284
                %v286 = vld [vmem:[%s170 + $0x388] sm:$0xff]
                %287 = vst [vmem:[%s171 + $0x1c8] sm:$0xff] %v286
                %v288 = vld [vmem:[%s170 + $0x390] sm:$0xff]
                %289 = vst [vmem:[%s171 + $0x1d0] sm:$0xff] %v288
                %v290 = vld [vmem:[%s170 + $0x398] sm:$0xff]
                %291 = vst [vmem:[%s171 + $0x1d8] sm:$0xff] %v290
                %v292 = vld [vmem:[%s170 + $0x3c0] sm:$0xff]
                %293 = vst [vmem:[%s171 + $0x1e0] sm:$0xff] %v292
                %v294 = vld [vmem:[%s170 + $0x3c8] sm:$0xff]
                %295 = vst [vmem:[%s171 + $0x1e8] sm:$0xff] %v294
                %v296 = vld [vmem:[%s170 + $0x3d0] sm:$0xff]
                %297 = vst [vmem:[%s171 + $0x1f0] sm:$0xff] %v296
                %v298 = vld [vmem:[%s170 + $0x3d8] sm:$0xff]
                %299 = vst [vmem:[%s171 + $0x1f8] sm:$0xff] %v298
              $region41: #{tpu_custom_call.1} parent=35 // loop_footer
                %s169 = sadd.s32 1, %s165
              $region42: #{tpu_custom_call.1} parent=35 // loop_footer_branch
                %164 = sbr.rel target = $region38
              $region43: #{tpu_custom_call.1} parent=35 // loop_exit
                _
            $region36: #{tpu_custom_call.1} parent=31 // pred_fallthru
              _
            // Predicated region
            $region44: #{tpu_custom_call.1} parent=31 // pred_check
              _
            $region45: #{tpu_custom_call.1} parent=31 // pred_check_branch
              %301 = sbr.rel target = $region47
            $region46: #{tpu_custom_call.1} parent=31 // pred_region
              _
            $region47: #{tpu_custom_call.1} parent=31 // pred_fallthru
              _
          $region32: #{tpu_custom_call.1} parent=27 // pred_fallthru
            _
          %302 = vnop
        $region28: #{tpu_custom_call.1} parent=23 // pred_fallthru
          _
        // Predicated region
        $region48: #{tpu_custom_call.1} parent=23 // pred_check
          %p303 = pneg %p56
        $region49: #{tpu_custom_call.1} parent=23 // pred_check_branch
          %305 = sbr.rel (%p303) target = $region51
        $region50: #{tpu_custom_call.1} parent=23 // pred_region
          %s306 = smul.u32 64, %s10
          %p307 = scmp.lt.s32.totalorder %s306, 127
          %s308 = scalar_select %p307, %s306, 127
          %s309 = smul.addr %s308, 8
          %s310 = scalar_lea.vmem %s1, %s309
          %s311 = smul.u32 64, %s10
        $region51: #{tpu_custom_call.1} parent=23 // pred_fallthru
          _
      $region24: #{tpu_custom_call.1} parent=5 // pred_fallthru
        _
      %p312 = scmp.le.s32.totalorder 1, %s10
      %p313 = scmp.lt.s32.totalorder %s10, 3
      %p314 = pnand %p312, %p313
      %p315 = pneg %p314
      // Predicated region
      $region52: #{tpu_custom_call.1} parent=5 // pred_check
        _
      $region53: #{tpu_custom_call.1} parent=5 // pred_check_branch
        %317 = sbr.rel (%p314) target = $region55
      $region54: #{tpu_custom_call.1} parent=5 // pred_region
        %s318 = ssub.s32 %s10, 1
        %s319 = sand.u32 %s23, 1
        %s320 = sand.u32 %s23, 1
        %s321 = smul.addr %s320, 512
        %s322 = scalar_lea.vmem [#allocation3], %s321
        // Predicated region
        $region56: #{tpu_custom_call.1} parent=54 // pred_check
          %p323 = pneg %p36
        $region57: #{tpu_custom_call.1} parent=54 // pred_check_branch
          %325 = sbr.rel (%p323) target = $region59
        $region58: #{tpu_custom_call.1} parent=54 // pred_region
          _
        $region59: #{tpu_custom_call.1} parent=54 // pred_fallthru
          _
        %s326 = sand.u32 %s23, 1
        %s327 = sand.u32 %s23, 1
        %s328 = smul.addr %s327, 512
        %s329 = scalar_lea.vmem [#allocation3], %s328
        %p330 = pneg %p36
        %p331 = pneg %p33
        %s332 = smul.u32 64, %s15
        %p333 = scmp.lt.s32.totalorder %s332, 127
        %s334 = scalar_select %p333, %s332, 127
        %s335 = smul.addr %s334, 8
        %s336 = scalar_lea.vmem %s1, %s335
        %p337 = pneg %p62
        %p338 = pneg %p59
        %p339 = pneg %p83
        %p340 = pneg %p80
        %p341 = pneg %p104
        %p342 = pneg %p101
        %p343 = pneg %p125
        %p344 = pneg %p122
        %s345 = smul.u32 4, %s15
        %s346 = smul.u32 64, %s15
        %p347 = scmp.lt.s32.totalorder %s346, 127
        %s348 = scalar_select %p347, %s346, 127
        %s349 = smul.addr %s348, 8
        %s350 = scalar_lea.vmem %s1, %s349
        %s351 = smul.u32 64, %s15
        %p352 = scmp.eq.s32.totalorder %s15, 0
        // Predicated region
        $region60: #{tpu_custom_call.1} parent=54 // pred_check
          %p353 = pneg %p352
        $region61: #{tpu_custom_call.1} parent=54 // pred_check_branch
          %355 = sbr.rel (%p353) target = $region63
        $region62: #{tpu_custom_call.1} parent=54 // pred_region
          %vm356 = vcmask 261120
          %357 = vst.msk [vmem:[#allocation2] sm:$0xff] %vm356, 0.0
          %358 = vst.msk [vmem:[#allocation2 + $0x8] sm:$0xff] %vm356, 0.0
          %359 = vst.msk [vmem:[#allocation2 + $0x10] sm:$0xff] %vm356, 0.0
          %360 = vst.msk [vmem:[#allocation2 + $0x18] sm:$0xff] %vm356, 0.0
          %361 = vst.msk [vmem:[#allocation2 + $0x20] sm:$0xff] %vm356, 0.0
          %362 = vst.msk [vmem:[#allocation2 + $0x28] sm:$0xff] %vm356, 0.0
          %363 = vst.msk [vmem:[#allocation2 + $0x30] sm:$0xff] %vm356, 0.0
          %364 = vst.msk [vmem:[#allocation2 + $0x38] sm:$0xff] %vm356, 0.0
          %365 = vst.msk [vmem:[#allocation2 + $0x40] sm:$0xff] %vm356, 0.0
          %366 = vst.msk [vmem:[#allocation2 + $0x48] sm:$0xff] %vm356, 0.0
          %367 = vst.msk [vmem:[#allocation2 + $0x50] sm:$0xff] %vm356, 0.0
          %368 = vst.msk [vmem:[#allocation2 + $0x58] sm:$0xff] %vm356, 0.0
          %369 = vst.msk [vmem:[#allocation2 + $0x60] sm:$0xff] %vm356, 0.0
          %370 = vst.msk [vmem:[#allocation2 + $0x68] sm:$0xff] %vm356, 0.0
          %371 = vst.msk [vmem:[#allocation2 + $0x70] sm:$0xff] %vm356, 0.0
          %372 = vst.msk [vmem:[#allocation2 + $0x78] sm:$0xff] %vm356, 0.0
        $region63: #{tpu_custom_call.1} parent=54 // pred_fallthru
          _
        %v373 = vld [vmem:[#allocation2] sm:$0xff]
        %v374 = vld [vmem:[#allocation2 + $0x8] sm:$0xff]
        %v375 = vld [vmem:[#allocation2 + $0x10] sm:$0xff]
        %v376 = vld [vmem:[#allocation2 + $0x18] sm:$0xff]
        %v377 = vld [vmem:[#allocation2 + $0x20] sm:$0xff]
        %v378 = vld [vmem:[#allocation2 + $0x28] sm:$0xff]
        %v379 = vld [vmem:[#allocation2 + $0x30] sm:$0xff]
        %v380 = vld [vmem:[#allocation2 + $0x38] sm:$0xff]
        %v381 = vld [vmem:[#allocation2 + $0x40] sm:$0xff]
        %v382 = vld [vmem:[#allocation2 + $0x48] sm:$0xff]
        %v383 = vld [vmem:[#allocation2 + $0x50] sm:$0xff]
        %v384 = vld [vmem:[#allocation2 + $0x58] sm:$0xff]
        %v385 = vld [vmem:[#allocation2 + $0x60] sm:$0xff]
        %v386 = vld [vmem:[#allocation2 + $0x68] sm:$0xff]
        %v387 = vld [vmem:[#allocation2 + $0x70] sm:$0xff]
        %v388 = vld [vmem:[#allocation2 + $0x78] sm:$0xff]
        %v389 = vld [vmem:[%s322] sm:$0xff]
        %v390 = vld [vmem:[%s322 + $0x8] sm:$0xff]
        %v391 = vld [vmem:[%s322 + $0x10] sm:$0xff]
        %v392 = vld [vmem:[%s322 + $0x18] sm:$0xff]
        %v393 = vld [vmem:[%s322 + $0x20] sm:$0xff]
        %v394 = vld [vmem:[%s322 + $0x28] sm:$0xff]
        %v395 = vld [vmem:[%s322 + $0x30] sm:$0xff]
        %v396 = vld [vmem:[%s322 + $0x38] sm:$0xff]
        %v397 = vld [vmem:[%s322 + $0x40] sm:$0xff]
        %v398 = vld [vmem:[%s322 + $0x48] sm:$0xff]
        %v399 = vld [vmem:[%s322 + $0x50] sm:$0xff]
        %v400 = vld [vmem:[%s322 + $0x58] sm:$0xff]
        %v401 = vld [vmem:[%s322 + $0x60] sm:$0xff]
        %v402 = vld [vmem:[%s322 + $0x68] sm:$0xff]
        %v403 = vld [vmem:[%s322 + $0x70] sm:$0xff]
        %v404 = vld [vmem:[%s322 + $0x78] sm:$0xff]
        %v405 = vld [vmem:[%s322 + $0x80] sm:$0xff]
        %v406 = vld [vmem:[%s322 + $0x88] sm:$0xff]
        %v407 = vld [vmem:[%s322 + $0x90] sm:$0xff]
        %v408 = vld [vmem:[%s322 + $0x98] sm:$0xff]
        %v409 = vld [vmem:[%s322 + $0xa0] sm:$0xff]
        %v410 = vld [vmem:[%s322 + $0xa8] sm:$0xff]
        %v411 = vld [vmem:[%s322 + $0xb0] sm:$0xff]
        %v412 = vld [vmem:[%s322 + $0xb8] sm:$0xff]
        %v413 = vld [vmem:[%s322 + $0xc0] sm:$0xff]
        %v414 = vld [vmem:[%s322 + $0xc8] sm:$0xff]
        %v415 = vld [vmem:[%s322 + $0xd0] sm:$0xff]
        %v416 = vld [vmem:[%s322 + $0xd8] sm:$0xff]
        %v417 = vld [vmem:[%s322 + $0xe0] sm:$0xff]
        %v418 = vld [vmem:[%s322 + $0xe8] sm:$0xff]
        %v419 = vld [vmem:[%s322 + $0xf0] sm:$0xff]
        %v420 = vld [vmem:[%s322 + $0xf8] sm:$0xff]
        %v421 = vld [vmem:[%s322 + $0x100] sm:$0xff]
        %v422 = vld [vmem:[%s322 + $0x108] sm:$0xff]
        %v423 = vld [vmem:[%s322 + $0x110] sm:$0xff]
        %v424 = vld [vmem:[%s322 + $0x118] sm:$0xff]
        %v425 = vld [vmem:[%s322 + $0x120] sm:$0xff]
        %v426 = vld [vmem:[%s322 + $0x128] sm:$0xff]
        %v427 = vld [vmem:[%s322 + $0x130] sm:$0xff]
        %v428 = vld [vmem:[%s322 + $0x138] sm:$0xff]
        %v429 = vld [vmem:[%s322 + $0x140] sm:$0xff]
        %v430 = vld [vmem:[%s322 + $0x148] sm:$0xff]
        %v431 = vld [vmem:[%s322 + $0x150] sm:$0xff]
        %v432 = vld [vmem:[%s322 + $0x158] sm:$0xff]
        %v433 = vld [vmem:[%s322 + $0x160] sm:$0xff]
        %v434 = vld [vmem:[%s322 + $0x168] sm:$0xff]
        %v435 = vld [vmem:[%s322 + $0x170] sm:$0xff]
        %v436 = vld [vmem:[%s322 + $0x178] sm:$0xff]
        %v437 = vld [vmem:[%s322 + $0x180] sm:$0xff]
        %v438 = vld [vmem:[%s322 + $0x188] sm:$0xff]
        %v439 = vld [vmem:[%s322 + $0x190] sm:$0xff]
        %v440 = vld [vmem:[%s322 + $0x198] sm:$0xff]
        %v441 = vld [vmem:[%s322 + $0x1a0] sm:$0xff]
        %v442 = vld [vmem:[%s322 + $0x1a8] sm:$0xff]
        %v443 = vld [vmem:[%s322 + $0x1b0] sm:$0xff]
        %v444 = vld [vmem:[%s322 + $0x1b8] sm:$0xff]
        %v445 = vld [vmem:[%s322 + $0x1c0] sm:$0xff]
        %v446 = vld [vmem:[%s322 + $0x1c8] sm:$0xff]
        %v447 = vld [vmem:[%s322 + $0x1d0] sm:$0xff]
        %v448 = vld [vmem:[%s322 + $0x1d8] sm:$0xff]
        %v449 = vld [vmem:[%s322 + $0x1e0] sm:$0xff]
        %v450 = vld [vmem:[%s322 + $0x1e8] sm:$0xff]
        %v451 = vld [vmem:[%s322 + $0x1f0] sm:$0xff]
        %v452 = vld [vmem:[%s322 + $0x1f8] sm:$0xff]
        %v453 = vld [vmem:[%s350] sm:$0xff]
        %v454 = vld [vmem:[%s350 + $0x8] sm:$0xff]
        %v455 = vld [vmem:[%s350 + $0x10] sm:$0xff]
        %v456 = vld [vmem:[%s350 + $0x18] sm:$0xff]
        %v457 = vld [vmem:[%s350 + $0x20] sm:$0xff]
        %v458 = vld [vmem:[%s350 + $0x28] sm:$0xff]
        %v459 = vld [vmem:[%s350 + $0x30] sm:$0xff]
        %v460 = vld [vmem:[%s350 + $0x38] sm:$0xff]
        %v461 = vld [vmem:[%s350 + $0x40] sm:$0xff]
        %v462 = vld [vmem:[%s350 + $0x48] sm:$0xff]
        %v463 = vld [vmem:[%s350 + $0x50] sm:$0xff]
        %v464 = vld [vmem:[%s350 + $0x58] sm:$0xff]
        %v465 = vld [vmem:[%s350 + $0x60] sm:$0xff]
        %v466 = vld [vmem:[%s350 + $0x68] sm:$0xff]
        %v467 = vld [vmem:[%s350 + $0x70] sm:$0xff]
        %v468 = vld [vmem:[%s350 + $0x78] sm:$0xff]
        %v469 = vld [vmem:[%s350 + $0x80] sm:$0xff]
        %v470 = vld [vmem:[%s350 + $0x88] sm:$0xff]
        %v471 = vld [vmem:[%s350 + $0x90] sm:$0xff]
        %v472 = vld [vmem:[%s350 + $0x98] sm:$0xff]
        %v473 = vld [vmem:[%s350 + $0xa0] sm:$0xff]
        %v474 = vld [vmem:[%s350 + $0xa8] sm:$0xff]
        %v475 = vld [vmem:[%s350 + $0xb0] sm:$0xff]
        %v476 = vld [vmem:[%s350 + $0xb8] sm:$0xff]
        %v477 = vld [vmem:[%s350 + $0xc0] sm:$0xff]
        %v478 = vld [vmem:[%s350 + $0xc8] sm:$0xff]
        %v479 = vld [vmem:[%s350 + $0xd0] sm:$0xff]
        %v480 = vld [vmem:[%s350 + $0xd8] sm:$0xff]
        %v481 = vld [vmem:[%s350 + $0xe0] sm:$0xff]
        %v482 = vld [vmem:[%s350 + $0xe8] sm:$0xff]
        %v483 = vld [vmem:[%s350 + $0xf0] sm:$0xff]
        %v484 = vld [vmem:[%s350 + $0xf8] sm:$0xff]
        %v485 = vld [vmem:[%s350 + $0x100] sm:$0xff]
        %v486 = vld [vmem:[%s350 + $0x108] sm:$0xff]
        %v487 = vld [vmem:[%s350 + $0x110] sm:$0xff]
        %v488 = vld [vmem:[%s350 + $0x118] sm:$0xff]
        %v489 = vld [vmem:[%s350 + $0x120] sm:$0xff]
        %v490 = vld [vmem:[%s350 + $0x128] sm:$0xff]
        %v491 = vld [vmem:[%s350 + $0x130] sm:$0xff]
        %v492 = vld [vmem:[%s350 + $0x138] sm:$0xff]
        %v493 = vld [vmem:[%s350 + $0x140] sm:$0xff]
        %v494 = vld [vmem:[%s350 + $0x148] sm:$0xff]
        %v495 = vld [vmem:[%s350 + $0x150] sm:$0xff]
        %v496 = vld [vmem:[%s350 + $0x158] sm:$0xff]
        %v497 = vld [vmem:[%s350 + $0x160] sm:$0xff]
        %v498 = vld [vmem:[%s350 + $0x168] sm:$0xff]
        %v499 = vld [vmem:[%s350 + $0x170] sm:$0xff]
        %v500 = vld [vmem:[%s350 + $0x178] sm:$0xff]
        %v501 = vld [vmem:[%s350 + $0x180] sm:$0xff]
        %v502 = vld [vmem:[%s350 + $0x188] sm:$0xff]
        %v503 = vld [vmem:[%s350 + $0x190] sm:$0xff]
        %v504 = vld [vmem:[%s350 + $0x198] sm:$0xff]
        %v505 = vld [vmem:[%s350 + $0x1a0] sm:$0xff]
        %v506 = vld [vmem:[%s350 + $0x1a8] sm:$0xff]
        %v507 = vld [vmem:[%s350 + $0x1b0] sm:$0xff]
        %v508 = vld [vmem:[%s350 + $0x1b8] sm:$0xff]
        %v509 = vld [vmem:[%s350 + $0x1c0] sm:$0xff]
        %v510 = vld [vmem:[%s350 + $0x1c8] sm:$0xff]
        %v511 = vld [vmem:[%s350 + $0x1d0] sm:$0xff]
        %v512 = vld [vmem:[%s350 + $0x1d8] sm:$0xff]
        %v513 = vld [vmem:[%s350 + $0x1e0] sm:$0xff]
        %v514 = vld [vmem:[%s350 + $0x1e8] sm:$0xff]
        %v515 = vld [vmem:[%s350 + $0x1f0] sm:$0xff]
        %v516 = vld [vmem:[%s350 + $0x1f8] sm:$0xff]
        %517 = vmatprep.subr.mxu0 0.0
        %518 = vmatpush1.msra.mxu0 %v453
        %519 = vmatprep.subr.mxu0 0.0
        %520 = vmatpush1.msra.mxu0 %v454
        %521 = vmatprep.subr.mxu0 0.0
        %522 = vmatpush1.msra.mxu0 %v455
        %523 = vmatprep.subr.mxu0 0.0
        %524 = vmatpush1.msra.mxu0 %v456
        %525 = vmatprep.subr.mxu0 0.0
        %526 = vmatpush1.msra.mxu0 %v457
        %527 = vmatprep.subr.mxu0 0.0
        %528 = vmatpush1.msra.mxu0 %v458
        %529 = vmatprep.subr.mxu0 0.0
        %530 = vmatpush1.msra.mxu0 %v459
        %531 = vmatprep.subr.mxu0 0.0
        %532 = vmatpush1.msra.mxu0 %v460
        %533 = vmatprep.subr.mxu0 0.0
        %534 = vmatpush1.msra.mxu0 %v461
        %535 = vmatprep.subr.mxu0 0.0
        %536 = vmatpush1.msra.mxu0 %v462
        %537 = vmatprep.subr.mxu0 0.0
        %538 = vmatpush1.msra.mxu0 %v463
        %539 = vmatprep.subr.mxu0 0.0
        %540 = vmatpush1.msra.mxu0 %v464
        %541 = vmatprep.subr.mxu0 0.0
        %542 = vmatpush1.msra.mxu0 %v465
        %543 = vmatprep.subr.mxu0 0.0
        %544 = vmatpush1.msra.mxu0 %v466
        %545 = vmatprep.subr.mxu0 0.0
        %546 = vmatpush1.msra.mxu0 %v467
        %547 = vmatprep.subr.mxu0 0.0
        %548 = vmatpush1.msra.mxu0 %v468
        %549 = vmatprep.subr.mxu0 0.0
        %550 = vmatpush1.msra.mxu0 %v469
        %551 = vmatprep.subr.mxu0 0.0
        %552 = vmatpush1.msra.mxu0 %v470
        %553 = vmatprep.subr.mxu0 0.0
        %554 = vmatpush1.msra.mxu0 %v471
        %555 = vmatprep.subr.mxu0 0.0
        %556 = vmatpush1.msra.mxu0 %v472
        %557 = vmatprep.subr.mxu0 0.0
        %558 = vmatpush1.msra.mxu0 %v473
        %559 = vmatprep.subr.mxu0 0.0
        %560 = vmatpush1.msra.mxu0 %v474
        %561 = vmatprep.subr.mxu0 0.0
        %562 = vmatpush1.msra.mxu0 %v475
        %563 = vmatprep.subr.mxu0 0.0
        %564 = vmatpush1.msra.mxu0 %v476
        %565 = vmatprep.subr.mxu0 0.0
        %566 = vmatpush1.msra.mxu0 %v477
        %567 = vmatprep.subr.mxu0 0.0
        %568 = vmatpush1.msra.mxu0 %v478
        %569 = vmatprep.subr.mxu0 0.0
        %570 = vmatpush1.msra.mxu0 %v479
        %571 = vmatprep.subr.mxu0 0.0
        %572 = vmatpush1.msra.mxu0 %v480
        %573 = vmatprep.subr.mxu0 0.0
        %574 = vmatpush1.msra.mxu0 %v481
        %575 = vmatprep.subr.mxu0 0.0
        %576 = vmatpush1.msra.mxu0 %v482
        %577 = vmatprep.subr.mxu0 0.0
        %578 = vmatpush1.msra.mxu0 %v483
        %579 = vmatprep.subr.mxu0 0.0
        %580 = vmatpush1.msra.mxu0 %v484
        %581 = vmatprep.mubr.f32.mxu0 %v390
        %582 = vmatmul.mubr.f32.gmra.mrb[0].mxu0 %v389
        %v583 = vpop.f32.mrb[0].mxu0
        %v584 = vadd.f32 0.0, %v583
        %v585 = vpop.f32.mrb[0].mxu0
        %586 = vmatprep.mubr.f32.mxu0 %v394
        %587 = vmatmul.mubr.f32.gmra.mrb[0].mxu0 %v393
        %v588 = vpop.f32.mrb[0].mxu0
        %v589 = vadd.f32 0.0, %v588
        %v590 = vpop.f32.mrb[0].mxu0
        %591 = vmatprep.mubr.f32.mxu0 %v398
        %592 = vmatmul.mubr.f32.gmra.mrb[0].mxu0 %v397
        %v593 = vpop.f32.mrb[0].mxu0
        %v594 = vadd.f32 0.0, %v593
        %v595 = vpop.f32.mrb[0].mxu0
        %596 = vmatprep.mubr.f32.mxu0 %v402
        %597 = vmatmul.mubr.f32.gmra.mrb[0].mxu0 %v401
        %v598 = vpop.f32.mrb[0].mxu0
        %v599 = vadd.f32 0.0, %v598
        %v600 = vpop.f32.mrb[0].mxu0
        %601 = vmatprep.mubr.f32.mxu0 %v406
        %602 = vmatmul.mubr.f32.gmra.mrb[0].mxu0 %v405
        %v603 = vpop.f32.mrb[0].mxu0
        %v604 = vadd.f32 0.0, %v603
        %v605 = vpop.f32.mrb[0].mxu0
        %606 = vmatprep.mubr.f32.mxu0 %v410
        %607 = vmatmul.mubr.f32.gmra.mrb[0].mxu0 %v409
        %v608 = vpop.f32.mrb[0].mxu0
        %v609 = vadd.f32 0.0, %v608
        %v610 = vpop.f32.mrb[0].mxu0
        %611 = vmatprep.mubr.f32.mxu0 %v414
        %612 = vmatmul.mubr.f32.gmra.mrb[0].mxu0 %v413
        %v613 = vpop.f32.mrb[0].mxu0
        %v614 = vadd.f32 0.0, %v613
        %v615 = vpop.f32.mrb[0].mxu0
        %616 = vmatprep.mubr.f32.mxu0 %v418
        %617 = vmatmul.mubr.f32.gmra.mrb[0].mxu0 %v417
        %v618 = vpop.f32.mrb[0].mxu0
        %v619 = vadd.f32 0.0, %v618
        %v620 = vpop.f32.mrb[0].mxu0
        %621 = vmatprep.mubr.f32.mxu0 %v422
        %622 = vmatmul.mubr.f32.gmra.mrb[0].mxu0 %v421
        %v623 = vpop.f32.mrb[0].mxu0
        %v624 = vadd.f32 0.0, %v623
        %v625 = vpop.f32.mrb[0].mxu0
        %626 = vmatprep.mubr.f32.mxu0 %v426
        %627 = vmatmul.mubr.f32.gmra.mrb[0].mxu0 %v425
        %v628 = vpop.f32.mrb[0].mxu0
        %v629 = vadd.f32 0.0, %v628
        %v630 = vpop.f32.mrb[0].mxu0
        %631 = vmatprep.mubr.f32.mxu0 %v430
        %632 = vmatmul.mubr.f32.gmra.mrb[0].mxu0 %v429
        %v633 = vpop.f32.mrb[0].mxu0
        %v634 = vadd.f32 0.0, %v633
        %v635 = vpop.f32.mrb[0].mxu0
        %636 = vmatprep.mubr.f32.mxu0 %v434
        %637 = vmatmul.mubr.f32.gmra.mrb[0].mxu0 %v433
        %v638 = vpop.f32.mrb[0].mxu0
        %v639 = vadd.f32 0.0, %v638
        %v640 = vpop.f32.mrb[0].mxu0
        %641 = vmatprep.mubr.f32.mxu0 %v438
        %642 = vmatmul.mubr.f32.gmra.mrb[0].mxu0 %v437
        %v643 = vpop.f32.mrb[0].mxu0
        %v644 = vadd.f32 0.0, %v643
        %v645 = vpop.f32.mrb[0].mxu0
        %646 = vmatprep.mubr.f32.mxu0 %v442
        %647 = vmatmul.mubr.f32.gmra.mrb[0].mxu0 %v441
        %v648 = vpop.f32.mrb[0].mxu0
        %v649 = vadd.f32 0.0, %v648
        %v650 = vpop.f32.mrb[0].mxu0
        %651 = vmatprep.mubr.f32.mxu0 %v446
        %652 = vmatmul.mubr.f32.gmra.mrb[0].mxu0 %v445
        %v653 = vpop.f32.mrb[0].mxu0
        %v654 = vadd.f32 0.0, %v653
        %v655 = vpop.f32.mrb[0].mxu0
        %656 = vmatprep.mubr.f32.mxu0 %v450
        %657 = vmatmul.mubr.f32.gmra.mrb[0].mxu0 %v449
        %v658 = vpop.f32.mrb[0].mxu0
        %v659 = vadd.f32 0.0, %v658
        %v660 = vpop.f32.mrb[0].mxu0
        %661 = vdwg.mxu0
        %662 = vmatprep.subr.mxu0 0.0
        %663 = vmatpush1.msra.mxu0 %v485
        %664 = vmatprep.subr.mxu0 0.0
        %665 = vmatpush1.msra.mxu0 %v486
        %666 = vmatprep.subr.mxu0 0.0
        %667 = vmatpush1.msra.mxu0 %v487
        %668 = vmatprep.subr.mxu0 0.0
        %669 = vmatpush1.msra.mxu0 %v488
        %670 = vmatprep.subr.mxu0 0.0
        %671 = vmatpush1.msra.mxu0 %v489
        %672 = vmatprep.subr.mxu0 0.0
        %673 = vmatpush1.msra.mxu0 %v490
        %674 = vmatprep.subr.mxu0 0.0
        %675 = vmatpush1.msra.mxu0 %v491
        %676 = vmatprep.subr.mxu0 0.0
        %677 = vmatpush1.msra.mxu0 %v492
        %678 = vmatprep.subr.mxu0 0.0
        %679 = vmatpush1.msra.mxu0 %v493
        %680 = vmatprep.subr.mxu0 0.0
        %681 = vmatpush1.msra.mxu0 %v494
        %682 = vmatprep.subr.mxu0 0.0
        %683 = vmatpush1.msra.mxu0 %v495
        %684 = vmatprep.subr.mxu0 0.0
        %685 = vmatpush1.msra.mxu0 %v496
        %686 = vmatprep.subr.mxu0 0.0
        %687 = vmatpush1.msra.mxu0 %v497
        %688 = vmatprep.subr.mxu0 0.0
        %689 = vmatpush1.msra.mxu0 %v498
        %690 = vmatprep.subr.mxu0 0.0
        %691 = vmatpush1.msra.mxu0 %v499
        %692 = vmatprep.subr.mxu0 0.0
        %693 = vmatpush1.msra.mxu0 %v500
        %694 = vmatprep.subr.mxu0 0.0
        %695 = vmatpush1.msra.mxu0 %v501
        %696 = vmatprep.subr.mxu0 0.0
        %697 = vmatpush1.msra.mxu0 %v502
        %698 = vmatprep.subr.mxu0 0.0
        %699 = vmatpush1.msra.mxu0 %v503
        %700 = vmatprep.subr.mxu0 0.0
        %701 = vmatpush1.msra.mxu0 %v504
        %702 = vmatprep.subr.mxu0 0.0
        %703 = vmatpush1.msra.mxu0 %v505
        %704 = vmatprep.subr.mxu0 0.0
        %705 = vmatpush1.msra.mxu0 %v506
        %706 = vmatprep.subr.mxu0 0.0
        %707 = vmatpush1.msra.mxu0 %v507
        %708 = vmatprep.subr.mxu0 0.0
        %709 = vmatpush1.msra.mxu0 %v508
        %710 = vmatprep.subr.mxu0 0.0
        %711 = vmatpush1.msra.mxu0 %v509
        %712 = vmatprep.subr.mxu0 0.0
        %713 = vmatpush1.msra.mxu0 %v510
        %714 = vmatprep.subr.mxu0 0.0
        %715 = vmatpush1.msra.mxu0 %v511
        %716 = vmatprep.subr.mxu0 0.0
        %717 = vmatpush1.msra.mxu0 %v512
        %718 = vmatprep.subr.mxu0 0.0
        %719 = vmatpush1.msra.mxu0 %v513
        %720 = vmatprep.subr.mxu0 0.0
        %721 = vmatpush1.msra.mxu0 %v514
        %722 = vmatprep.subr.mxu0 0.0
        %723 = vmatpush1.msra.mxu0 %v515
        %724 = vmatprep.subr.mxu0 0.0
        %725 = vmatpush1.msra.mxu0 %v516
        %726 = vmatprep.mubr.f32.mxu0 %v392
        %727 = vmatmul.mubr.f32.gmra.mrb[0].mxu0 %v391
        %v728 = vpop.f32.mrb[0].mxu0
        %v729 = vadd.f32 %v584, %v728
        %v730 = vpop.f32.mrb[0].mxu0
        %731 = vmatprep.mubr.f32.mxu0 %v396
        %732 = vmatmul.mubr.f32.gmra.mrb[0].mxu0 %v395
        %v733 = vpop.f32.mrb[0].mxu0
        %v734 = vadd.f32 %v589, %v733
        %v735 = vpop.f32.mrb[0].mxu0
        %736 = vmatprep.mubr.f32.mxu0 %v400
        %737 = vmatmul.mubr.f32.gmra.mrb[0].mxu0 %v399
        %v738 = vpop.f32.mrb[0].mxu0
        %v739 = vadd.f32 %v594, %v738
        %v740 = vpop.f32.mrb[0].mxu0
        %741 = vmatprep.mubr.f32.mxu0 %v404
        %742 = vmatmul.mubr.f32.gmra.mrb[0].mxu0 %v403
        %v743 = vpop.f32.mrb[0].mxu0
        %v744 = vadd.f32 %v599, %v743
        %v745 = vpop.f32.mrb[0].mxu0
        %746 = vmatprep.mubr.f32.mxu0 %v408
        %747 = vmatmul.mubr.f32.gmra.mrb[0].mxu0 %v407
        %v748 = vpop.f32.mrb[0].mxu0
        %v749 = vadd.f32 %v604, %v748
        %v750 = vpop.f32.mrb[0].mxu0
        %751 = vmatprep.mubr.f32.mxu0 %v412
        %752 = vmatmul.mubr.f32.gmra.mrb[0].mxu0 %v411
        %v753 = vpop.f32.mrb[0].mxu0
        %v754 = vadd.f32 %v609, %v753
        %v755 = vpop.f32.mrb[0].mxu0
        %756 = vmatprep.mubr.f32.mxu0 %v416
        %757 = vmatmul.mubr.f32.gmra.mrb[0].mxu0 %v415
        %v758 = vpop.f32.mrb[0].mxu0
        %v759 = vadd.f32 %v614, %v758
        %v760 = vpop.f32.mrb[0].mxu0
        %761 = vmatprep.mubr.f32.mxu0 %v420
        %762 = vmatmul.mubr.f32.gmra.mrb[0].mxu0 %v419
        %v763 = vpop.f32.mrb[0].mxu0
        %v764 = vadd.f32 %v619, %v763
        %v765 = vpop.f32.mrb[0].mxu0
        %766 = vmatprep.mubr.f32.mxu0 %v424
        %767 = vmatmul.mubr.f32.gmra.mrb[0].mxu0 %v423
        %v768 = vpop.f32.mrb[0].mxu0
        %v769 = vadd.f32 %v624, %v768
        %v770 = vpop.f32.mrb[0].mxu0
        %771 = vmatprep.mubr.f32.mxu0 %v428
        %772 = vmatmul.mubr.f32.gmra.mrb[0].mxu0 %v427
        %v773 = vpop.f32.mrb[0].mxu0
        %v774 = vadd.f32 %v629, %v773
        %v775 = vpop.f32.mrb[0].mxu0
        %776 = vmatprep.mubr.f32.mxu0 %v432
        %777 = vmatmul.mubr.f32.gmra.mrb[0].mxu0 %v431
        %v778 = vpop.f32.mrb[0].mxu0
        %v779 = vadd.f32 %v634, %v778
        %v780 = vpop.f32.mrb[0].mxu0
        %781 = vmatprep.mubr.f32.mxu0 %v436
        %782 = vmatmul.mubr.f32.gmra.mrb[0].mxu0 %v435
        %v783 = vpop.f32.mrb[0].mxu0
        %v784 = vadd.f32 %v639, %v783
        %v785 = vpop.f32.mrb[0].mxu0
        %786 = vmatprep.mubr.f32.mxu0 %v440
        %787 = vmatmul.mubr.f32.gmra.mrb[0].mxu0 %v439
        %v788 = vpop.f32.mrb[0].mxu0
        %v789 = vadd.f32 %v644, %v788
        %v790 = vpop.f32.mrb[0].mxu0
        %791 = vmatprep.mubr.f32.mxu0 %v444
        %792 = vmatmul.mubr.f32.gmra.mrb[0].mxu0 %v443
        %v793 = vpop.f32.mrb[0].mxu0
        %v794 = vadd.f32 %v649, %v793
        %v795 = vpop.f32.mrb[0].mxu0
        %796 = vmatprep.mubr.f32.mxu0 %v448
        %797 = vmatmul.mubr.f32.gmra.mrb[0].mxu0 %v447
        %v798 = vpop.f32.mrb[0].mxu0
        %v799 = vadd.f32 %v654, %v798
        %v800 = vpop.f32.mrb[0].mxu0
        %801 = vmatprep.mubr.f32.mxu0 %v452
        %802 = vmatmul.mubr.f32.gmra.mrb[0].mxu0 %v451
        %v803 = vpop.f32.mrb[0].mxu0
        %v804 = vadd.f32 %v659, %v803
        %v805 = vpop.f32.mrb[0].mxu0
        %806 = vdwg.mxu0
        %v807 = vadd.f32 %v373, %v729
        %v808 = vadd.f32 %v374, %v734
        %v809 = vadd.f32 %v375, %v739
        %v810 = vadd.f32 %v376, %v744
        %v811 = vadd.f32 %v377, %v749
        %v812 = vadd.f32 %v378, %v754
        %v813 = vadd.f32 %v379, %v759
        %v814 = vadd.f32 %v380, %v764
        %v815 = vadd.f32 %v381, %v769
        %v816 = vadd.f32 %v382, %v774
        %v817 = vadd.f32 %v383, %v779
        %v818 = vadd.f32 %v384, %v784
        %v819 = vadd.f32 %v385, %v789
        %v820 = vadd.f32 %v386, %v794
        %v821 = vadd.f32 %v387, %v799
        %v822 = vadd.f32 %v388, %v804
        %vm823 = vcmask 261120
        %824 = vst.msk [vmem:[#allocation2] sm:$0xff] %vm823, %v807
        %825 = vst.msk [vmem:[#allocation2 + $0x8] sm:$0xff] %vm823, %v808
        %826 = vst.msk [vmem:[#allocation2 + $0x10] sm:$0xff] %vm823, %v809
        %827 = vst.msk [vmem:[#allocation2 + $0x18] sm:$0xff] %vm823, %v810
        %828 = vst.msk [vmem:[#allocation2 + $0x20] sm:$0xff] %vm823, %v811
        %829 = vst.msk [vmem:[#allocation2 + $0x28] sm:$0xff] %vm823, %v812
        %830 = vst.msk [vmem:[#allocation2 + $0x30] sm:$0xff] %vm823, %v813
        %831 = vst.msk [vmem:[#allocation2 + $0x38] sm:$0xff] %vm823, %v814
        %832 = vst.msk [vmem:[#allocation2 + $0x40] sm:$0xff] %vm823, %v815
        %833 = vst.msk [vmem:[#allocation2 + $0x48] sm:$0xff] %vm823, %v816
        %834 = vst.msk [vmem:[#allocation2 + $0x50] sm:$0xff] %vm823, %v817
        %835 = vst.msk [vmem:[#allocation2 + $0x58] sm:$0xff] %vm823, %v818
        %836 = vst.msk [vmem:[#allocation2 + $0x60] sm:$0xff] %vm823, %v819
        %837 = vst.msk [vmem:[#allocation2 + $0x68] sm:$0xff] %vm823, %v820
        %838 = vst.msk [vmem:[#allocation2 + $0x70] sm:$0xff] %vm823, %v821
        %839 = vst.msk [vmem:[#allocation2 + $0x78] sm:$0xff] %vm823, %v822
        %p840 = scmp.eq.s32.totalorder %s15, 1
        // Predicated region
        $region64: #{tpu_custom_call.1} parent=54 // pred_check
          %p841 = pneg %p840
        $region65: #{tpu_custom_call.1} parent=54 // pred_check_branch
          %843 = sbr.rel (%p841) target = $region67
        $region66: #{tpu_custom_call.1} parent=54 // pred_region
          %v844 = vld [vmem:[#allocation2] sm:$0xff]
          %v845 = vld [vmem:[#allocation2 + $0x8] sm:$0xff]
          %v846 = vld [vmem:[#allocation2 + $0x10] sm:$0xff]
          %v847 = vld [vmem:[#allocation2 + $0x18] sm:$0xff]
          %v848 = vld [vmem:[#allocation2 + $0x20] sm:$0xff]
          %v849 = vld [vmem:[#allocation2 + $0x28] sm:$0xff]
          %v850 = vld [vmem:[#allocation2 + $0x30] sm:$0xff]
          %v851 = vld [vmem:[#allocation2 + $0x38] sm:$0xff]
          %v852 = vld [vmem:[#allocation2 + $0x40] sm:$0xff]
          %v853 = vld [vmem:[#allocation2 + $0x48] sm:$0xff]
          %v854 = vld [vmem:[#allocation2 + $0x50] sm:$0xff]
          %v855 = vld [vmem:[#allocation2 + $0x58] sm:$0xff]
          %v856 = vld [vmem:[#allocation2 + $0x60] sm:$0xff]
          %v857 = vld [vmem:[#allocation2 + $0x68] sm:$0xff]
          %v858 = vld [vmem:[#allocation2 + $0x70] sm:$0xff]
          %v859 = vld [vmem:[#allocation2 + $0x78] sm:$0xff]
          %v860 = vld [vmem:[%s2] sm:$0x1]
          %v862 = vlaneseq
          %v863 = vshrl.u32 %v862, 7
          %v864 = vsub.s32 0, %v863
          %v865 = vrot.slane %v860, %v864
          %v867 = vmul.f32 %v844, %v865
          %v868 = vmul.f32 %v845, %v865
          %v869 = vmul.f32 %v846, %v865
          %v870 = vmul.f32 %v847, %v865
          %v871 = vmul.f32 %v848, %v865
          %v872 = vmul.f32 %v849, %v865
          %v873 = vmul.f32 %v850, %v865
          %v874 = vmul.f32 %v851, %v865
          %v875 = vmul.f32 %v852, %v865
          %v876 = vmul.f32 %v853, %v865
          %v877 = vmul.f32 %v854, %v865
          %v878 = vmul.f32 %v855, %v865
          %v879 = vmul.f32 %v856, %v865
          %v880 = vmul.f32 %v857, %v865
          %v881 = vmul.f32 %v858, %v865
          %v882 = vmul.f32 %v859, %v865
          %v883 = vld [vmem:[%s3] sm:$0x1]
          %v885 = vlaneseq
          %v886 = vshrl.u32 %v885, 7
          %v887 = vsub.s32 0, %v886
          %v888 = vrot.slane %v883, %v887
          %v890 = vadd.f32 %v867, %v888
          %v891 = vadd.f32 %v868, %v888
          %v892 = vadd.f32 %v869, %v888
          %v893 = vadd.f32 %v870, %v888
          %v894 = vadd.f32 %v871, %v888
          %v895 = vadd.f32 %v872, %v888
          %v896 = vadd.f32 %v873, %v888
          %v897 = vadd.f32 %v874, %v888
          %v898 = vadd.f32 %v875, %v888
          %v899 = vadd.f32 %v876, %v888
          %v900 = vadd.f32 %v877, %v888
          %v901 = vadd.f32 %v878, %v888
          %v902 = vadd.f32 %v879, %v888
          %v903 = vadd.f32 %v880, %v888
          %v904 = vadd.f32 %v881, %v888
          %v905 = vadd.f32 %v882, %v888
          %v906 = vmax.f32 %v890, 0.0
          %v907 = vmax.f32 %v891, 0.0
          %v908 = vmax.f32 %v892, 0.0
          %v909 = vmax.f32 %v893, 0.0
          %v910 = vmax.f32 %v894, 0.0
          %v911 = vmax.f32 %v895, 0.0
          %v912 = vmax.f32 %v896, 0.0
          %v913 = vmax.f32 %v897, 0.0
          %v914 = vmax.f32 %v898, 0.0
          %v915 = vmax.f32 %v899, 0.0
          %v916 = vmax.f32 %v900, 0.0
          %v917 = vmax.f32 %v901, 0.0
          %v918 = vmax.f32 %v902, 0.0
          %v919 = vmax.f32 %v903, 0.0
          %v920 = vmax.f32 %v904, 0.0
          %v921 = vmax.f32 %v905, 0.0
          %922 = vst.msk [vmem:[%s4] sm:$0xff] %vm823, %v906
          %923 = vst.msk [vmem:[%s4 + $0x8] sm:$0xff] %vm823, %v907
          %924 = vst.msk [vmem:[%s4 + $0x10] sm:$0xff] %vm823, %v908
          %925 = vst.msk [vmem:[%s4 + $0x18] sm:$0xff] %vm823, %v909
          %926 = vst.msk [vmem:[%s4 + $0x20] sm:$0xff] %vm823, %v910
          %927 = vst.msk [vmem:[%s4 + $0x28] sm:$0xff] %vm823, %v911
          %928 = vst.msk [vmem:[%s4 + $0x30] sm:$0xff] %vm823, %v912
          %929 = vst.msk [vmem:[%s4 + $0x38] sm:$0xff] %vm823, %v913
          %930 = vst.msk [vmem:[%s4 + $0x40] sm:$0xff] %vm823, %v914
          %931 = vst.msk [vmem:[%s4 + $0x48] sm:$0xff] %vm823, %v915
          %932 = vst.msk [vmem:[%s4 + $0x50] sm:$0xff] %vm823, %v916
          %933 = vst.msk [vmem:[%s4 + $0x58] sm:$0xff] %vm823, %v917
          %934 = vst.msk [vmem:[%s4 + $0x60] sm:$0xff] %vm823, %v918
          %935 = vst.msk [vmem:[%s4 + $0x68] sm:$0xff] %vm823, %v919
          %936 = vst.msk [vmem:[%s4 + $0x70] sm:$0xff] %vm823, %v920
          %937 = vst.msk [vmem:[%s4 + $0x78] sm:$0xff] %vm823, %v921
        $region67: #{tpu_custom_call.1} parent=54 // pred_fallthru
          _
        // Predicated region
        $region68: #{tpu_custom_call.1} parent=54 // pred_check
          %p938 = pneg %p122
        $region69: #{tpu_custom_call.1} parent=54 // pred_check_branch
          %940 = sbr.rel (%p938) target = $region71
        $region70: #{tpu_custom_call.1} parent=54 // pred_region
          _
        $region71: #{tpu_custom_call.1} parent=54 // pred_fallthru
          _
        // Predicated region
        $region72: #{tpu_custom_call.1} parent=54 // pred_check
          %p941 = pneg %p122
        $region73: #{tpu_custom_call.1} parent=54 // pred_check_branch
          %943 = sbr.rel (%p941) target = $region75
        $region74: #{tpu_custom_call.1} parent=54 // pred_region
          _
        $region75: #{tpu_custom_call.1} parent=54 // pred_fallthru
          _
      $region55: #{tpu_custom_call.1} parent=5 // pred_fallthru
        _
      %p944 = scmp.le.s32.totalorder 2, %s10
      // Predicated region
      $region76: #{tpu_custom_call.1} parent=5 // pred_check
        %p945 = pneg %p944
      $region77: #{tpu_custom_call.1} parent=5 // pred_check_branch
        %947 = sbr.rel (%p945) target = $region79
      $region78: #{tpu_custom_call.1} parent=5 // pred_region
        %s948 = ssub.s32 %s10, 2
      $region79: #{tpu_custom_call.1} parent=5 // pred_fallthru
        _
    $region6: #{tpu_custom_call.1} parent=1 // loop_footer
      %s14 = sadd.s32 1, %s10
    $region7: #{tpu_custom_call.1} parent=1 // loop_footer_branch
      %9 = sbr.rel target = $region3
    $region8: #{tpu_custom_call.1} parent=1 // loop_exit
      _

</llo_original>
